<compile_context>
chip_gen: v5e
topology: v5e:2x2
jax: 0.10.0
libtpu: 0.0.40
codegen_flags: <defaults>
</compile_context>

<pallas_src>
import jax
import jax.numpy as jnp
from jax.experimental import pallas as pl
from jax.experimental.pallas import tpu as pltpu

D_IN = 32
HID = 64
EMB = 512          # must be 512 to match nn.LayerNorm(512) in the reference
EPS = 1e-5

TARGET_STEPS = 4   # aim for >= 4 grid steps (>= 2 per TC on v7x megacore)
MIN_TB = 256       # amortize ~0.35 us fixed per-step overhead


def _device_kind():
    try:
        return jax.devices()[0].device_kind.lower()
    except Exception:
        return ""


_IS_V7 = "v7" in _device_kind()
MAX_TB = 2048 if _IS_V7 else 1024
VMEM_LIMIT_BYTES = (48 if _IS_V7 else 32) * 1024 * 1024


def _layernorm(h, gamma, beta, n):
    # Two-pass LayerNorm (PyTorch-equivalent): mu, then E[(h-mu)^2].
    inv_n = 1.0 / n
    mu = jnp.sum(h, axis=-1, keepdims=True) * inv_n
    d = h - mu
    var = jnp.sum(d * d, axis=-1, keepdims=True) * inv_n
    return d * jax.lax.rsqrt(var + EPS) * gamma + beta


def mlp_encoder_kernel(x_ref, w1_ref, p1_ref, w2_ref, p2_ref, o_ref):
    # Packed parameter rows: [bias; ln_gamma; ln_beta] (f32).
    b1, g1, be1 = p1_ref[0:1, :], p1_ref[1:2, :], p1_ref[2:3, :]
    b2, g2, be2 = p2_ref[0:1, :], p2_ref[1:2, :], p2_ref[2:3, :]

    # Linear 1: operands in the weight dtype (bf16 by default -> ~3x fewer MXU
    # passes than f32), f32 accumulation.  relu + LayerNorm(64) in f32.
    x = x_ref[...].astype(w1_ref.dtype)
    h = jnp.dot(x, w1_ref[...], preferred_element_type=jnp.float32) + b1
    h = jnp.maximum(h, 0.0)
    h = _layernorm(h, g1, be1, HID)

    # Linear 2 + LayerNorm(512), same precision policy.
    y = jnp.dot(h.astype(w2_ref.dtype), w2_ref[...],
                preferred_element_type=jnp.float32) + b2
    y = _layernorm(y, g2, be2, EMB)

    o_ref[...] = y.astype(o_ref.dtype)


def _round_up(x, m):
    return (x + m - 1) // m * m


def _choose_tb(b):
    """Batch tile: single step for small B, else >= TARGET_STEPS steps with a
    256-row floor (per-step overhead) and a per-generation MAX_TB cap."""
    b8 = _round_up(max(b, 8), 8)
    if b8 <= MIN_TB:
        return b8
    tb = _round_up(pl.cdiv(b, TARGET_STEPS), 8)
    return max(MIN_TB, min(tb, MAX_TB))


def mlp_encoder(x, params, *, compute_dtype=jnp.bfloat16, out_dtype=jnp.float32):
    """Fused Linear->relu->LN(64)->Linear->LN(512).

    compute_dtype: dtype of the MXU matmul operands (accumulation always f32).
    out_dtype:     output dtype; bf16 halves HBM writeback on v5e/v6e.
    """
    w1, b1, g1, be1, w2, b2, g2, be2 = params
    B = x.shape[0]
    tb = _choose_tb(B)
    Bp = _round_up(B, tb)
    if Bp != B:
        x = jnp.pad(x, ((0, Bp - B), (0, 0)))   # tail rows computed then sliced off

    # Matmul weights in the compute dtype; small params packed and kept f32.
    w1c = w1.astype(compute_dtype)
    w2c = w2.astype(compute_dtype)
    p1 = jnp.concatenate([b1, g1, be1], axis=0)   # (3, HID)  f32
    p2 = jnp.concatenate([b2, g2, be2], axis=0)   # (3, EMB)  f32

    row = lambda i: (i, 0)      # batch-tiled operands
    rep = lambda i: (0, 0)      # replicated params (constant block -> stay resident)

    out = pl.pallas_call(
        mlp_encoder_kernel,
        out_shape=jax.ShapeDtypeStruct((Bp, EMB), out_dtype),
        grid_spec=pltpu.PrefetchScalarGridSpec(
            num_scalar_prefetch=0,
            grid=(Bp // tb,),
            in_specs=[
                pl.BlockSpec((tb, D_IN), row),
                pl.BlockSpec((D_IN, HID), rep),
                pl.BlockSpec((3, HID), rep),
                pl.BlockSpec((HID, EMB), rep),
                pl.BlockSpec((3, EMB), rep),
            ],
            out_specs=pl.BlockSpec((tb, EMB), row),
        ),
        compiler_params=pltpu.CompilerParams(
            dimension_semantics=("parallel",),
            vmem_limit_bytes=VMEM_LIMIT_BYTES,
        ),
    )(x, w1c, p1, w2c, p2)

    return out[:B] if Bp != B else out


def init_params(key):
    k1, k2, k3, k4 = jax.random.split(key, 4)
    # Deterministic synthetic init (PyTorch-style uniform bounds).
    bound1 = 1.0 / (D_IN ** 0.5)
    w1 = jax.random.uniform(k1, (D_IN, HID), jnp.float32, -bound1, bound1)
    b1 = jax.random.uniform(k2, (1, HID), jnp.float32, -bound1, bound1)
    bound2 = 1.0 / (HID ** 0.5)
    w2 = jax.random.uniform(k3, (HID, EMB), jnp.float32, -bound2, bound2)
    b2 = jax.random.uniform(k4, (1, EMB), jnp.float32, -bound2, bound2)
    # LayerNorm affine params (PyTorch default: ones / zeros).
    g1 = jnp.ones((1, HID), jnp.float32)
    be1 = jnp.zeros((1, HID), jnp.float32)
    g2 = jnp.ones((1, EMB), jnp.float32)
    be2 = jnp.zeros((1, EMB), jnp.float32)
    return (w1, b1, g1, be1, w2, b2, g2, be2)


def reference(x, params):
    # Pure-JAX f32 reference (two-pass LayerNorm, PyTorch-equivalent).
    w1, b1, g1, be1, w2, b2, g2, be2 = params

    def ln(h, gamma, beta):
        mu = jnp.mean(h, axis=-1, keepdims=True)
        var = jnp.mean((h - mu) * (h - mu), axis=-1, keepdims=True)
        return (h - mu) * jax.lax.rsqrt(var + EPS) * gamma + beta

    h = x @ w1 + b1
    h = jnp.maximum(h, 0.0)
    h = ln(h, g1, be1)
    y = h @ w2 + b2
    return ln(y, g2, be2)


if __name__ == "__main__":
    key = jax.random.PRNGKey(0)
    kx, kp, kx2 = jax.random.split(key, 3)
    params = init_params(kp)

    # 1) Small batch, full-f32 compute path: strict numerical check.
    B = 8
    x = jax.random.normal(kx, (B, D_IN), jnp.float32)
    out = jax.block_until_ready(mlp_encoder(x, params, compute_dtype=jnp.float32))
    ref = reference(x, params)
    assert out.shape == (B, EMB)
    assert jnp.allclose(out, ref, atol=1e-3, rtol=1e-3)

    # 2) Mid batch, default path (bf16 MXU operands, f32 accum/LN/output):
    #    exercises batch padding and the multi-step grid; looser tolerance for
    #    bf16 matmul operands.
    B2 = 300
    x2 = jax.random.normal(kx2, (B2, D_IN), jnp.float32)
    out2 = jax.block_until_ready(mlp_encoder(x2, params))
    ref2 = reference(x2, params)
    assert out2.shape == (B2, EMB)
    assert jnp.allclose(out2, ref2, atol=5e-2, rtol=5e-2)

    # 3) bf16 output path (halves the dominant HBM writeback on v5e/v6e).
    out3 = jax.block_until_ready(
        mlp_encoder(x2, params, out_dtype=jnp.bfloat16))
    assert out3.dtype == jnp.bfloat16 and out3.shape == (B2, EMB)
    assert jnp.allclose(out3.astype(jnp.float32), ref2, atol=1e-1, rtol=1e-1)

    print("KERNEL_OK")
</pallas_src>

<mosaic_0001>
module attributes {stable_mosaic.version = 11 : i64} {
  func.func @mlp_encoder_kernel(%arg0: i32, %arg1: memref<8x32xf32, #tpu.memory_space<vmem>>, %arg2: memref<32x64xf32, #tpu.memory_space<vmem>>, %arg3: memref<3x64xf32, #tpu.memory_space<vmem>>, %arg4: memref<64x512xf32, #tpu.memory_space<vmem>>, %arg5: memref<3x512xf32, #tpu.memory_space<vmem>>, %arg6: memref<8x512xf32, #tpu.memory_space<vmem>>) attributes {dimension_semantics = [#tpu.dimension_semantics<parallel>], iteration_bounds = array<i64: 1>, scalar_prefetch = 0 : i64, scratch_operands = 0 : i64, tpu.core_type = #tpu.core_type<tc>, window_params = [{transform_indices = @transform_0, window_bounds = array<i64: 8, 32>}, {pipeline_mode = #tpu.pipeline_mode<synchronous>, transform_indices = @transform_1, window_bounds = array<i64: 32, 64>}, {pipeline_mode = #tpu.pipeline_mode<synchronous>, transform_indices = @transform_2, window_bounds = array<i64: 3, 64>}, {pipeline_mode = #tpu.pipeline_mode<synchronous>, transform_indices = @transform_3, window_bounds = array<i64: 64, 512>}, {pipeline_mode = #tpu.pipeline_mode<synchronous>, transform_indices = @transform_4, window_bounds = array<i64: 3, 512>}, {transform_indices = @transform_5, window_bounds = array<i64: 8, 512>}]} {
    %c0 = arith.constant 0 : index
    %c0_0 = arith.constant 0 : index
    %0 = vector.load %arg3[%c0, %c0_0] : memref<3x64xf32, #tpu.memory_space<vmem>>, vector<1x64xf32>
    %c1 = arith.constant 1 : index
    %c0_1 = arith.constant 0 : index
    %1 = vector.load %arg3[%c1, %c0_1] : memref<3x64xf32, #tpu.memory_space<vmem>>, vector<1x64xf32>
    %c2 = arith.constant 2 : index
    %c0_2 = arith.constant 0 : index
    %2 = vector.load %arg3[%c2, %c0_2] : memref<3x64xf32, #tpu.memory_space<vmem>>, vector<1x64xf32>
    %c0_3 = arith.constant 0 : index
    %c0_4 = arith.constant 0 : index
    %3 = vector.load %arg5[%c0_3, %c0_4] : memref<3x512xf32, #tpu.memory_space<vmem>>, vector<1x512xf32>
    %c1_5 = arith.constant 1 : index
    %c0_6 = arith.constant 0 : index
    %4 = vector.load %arg5[%c1_5, %c0_6] : memref<3x512xf32, #tpu.memory_space<vmem>>, vector<1x512xf32>
    %c2_7 = arith.constant 2 : index
    %c0_8 = arith.constant 0 : index
    %5 = vector.load %arg5[%c2_7, %c0_8] : memref<3x512xf32, #tpu.memory_space<vmem>>, vector<1x512xf32>
    %c0_9 = arith.constant 0 : index
    %c0_10 = arith.constant 0 : index
    %6 = vector.load %arg1[%c0_9, %c0_10] : memref<8x32xf32, #tpu.memory_space<vmem>>, vector<8x32xf32>
    %c0_11 = arith.constant 0 : index
    %c0_12 = arith.constant 0 : index
    %7 = vector.load %arg2[%c0_11, %c0_12] : memref<32x64xf32, #tpu.memory_space<vmem>>, vector<32x64xf32>
    %cst = arith.constant dense<0.000000e+00> : vector<8x64xf32>
    %8 = tpu.matmul %6, %7, %cst {dimension_numbers = #tpu.dot_dimension_numbers<[1], [0], [0], [1], [0, 0, 1, 1], [], []>} : vector<8x32xf32>, vector<32x64xf32>, vector<8x64xf32> -> vector<8x64xf32>
    %9 = vector.broadcast %0 : vector<1x64xf32> to vector<8x64xf32>
    %10 = arith.addf %8, %9 : vector<8x64xf32>
    %cst_13 = arith.constant 0.000000e+00 : f32
    %11 = vector.broadcast %cst_13 : f32 to vector<8x64xf32>
    %12 = arith.maximumf %10, %11 : vector<8x64xf32>
    %cst_14 = arith.constant dense<0.000000e+00> : vector<8xf32>
    %13 = vector.multi_reduction <add>, %12, %cst_14 [1] : vector<8x64xf32> to vector<8xf32>
    %14 = vector.shape_cast %13 : vector<8xf32> to vector<8x1xf32>
    %cst_15 = arith.constant 1.562500e-02 : f32
    %15 = vector.broadcast %cst_15 : f32 to vector<8x1xf32>
    %16 = arith.mulf %14, %15 : vector<8x1xf32>
    %17 = vector.broadcast %16 : vector<8x1xf32> to vector<8x64xf32>
    %18 = arith.subf %12, %17 : vector<8x64xf32>
    %19 = arith.mulf %18, %18 : vector<8x64xf32>
    %cst_16 = arith.constant dense<0.000000e+00> : vector<8xf32>
    %20 = vector.multi_reduction <add>, %19, %cst_16 [1] : vector<8x64xf32> to vector<8xf32>
    %21 = vector.shape_cast %20 : vector<8xf32> to vector<8x1xf32>
    %cst_17 = arith.constant 1.562500e-02 : f32
    %22 = vector.broadcast %cst_17 : f32 to vector<8x1xf32>
    %23 = arith.mulf %21, %22 : vector<8x1xf32>
    %cst_18 = arith.constant 9.99999974E-6 : f32
    %24 = vector.broadcast %cst_18 : f32 to vector<8x1xf32>
    %25 = arith.addf %23, %24 : vector<8x1xf32>
    %26 = math.rsqrt %25 : vector<8x1xf32>
    %27 = vector.broadcast %26 : vector<8x1xf32> to vector<8x64xf32>
    %28 = arith.mulf %18, %27 : vector<8x64xf32>
    %29 = vector.broadcast %1 : vector<1x64xf32> to vector<8x64xf32>
    %30 = arith.mulf %28, %29 : vector<8x64xf32>
    %31 = vector.broadcast %2 : vector<1x64xf32> to vector<8x64xf32>
    %32 = arith.addf %30, %31 : vector<8x64xf32>
    %c0_19 = arith.constant 0 : index
    %c0_20 = arith.constant 0 : index
    %33 = vector.load %arg4[%c0_19, %c0_20] : memref<64x512xf32, #tpu.memory_space<vmem>>, vector<64x512xf32>
    %cst_21 = arith.constant dense<0.000000e+00> : vector<8x512xf32>
    %34 = tpu.matmul %32, %33, %cst_21 {dimension_numbers = #tpu.dot_dimension_numbers<[1], [0], [0], [1], [0, 0, 1, 1], [], []>} : vector<8x64xf32>, vector<64x512xf32>, vector<8x512xf32> -> vector<8x512xf32>
    %35 = vector.broadcast %3 : vector<1x512xf32> to vector<8x512xf32>
    %36 = arith.addf %34, %35 : vector<8x512xf32>
    %cst_22 = arith.constant dense<0.000000e+00> : vector<8xf32>
    %37 = vector.multi_reduction <add>, %36, %cst_22 [1] : vector<8x512xf32> to vector<8xf32>
    %38 = vector.shape_cast %37 : vector<8xf32> to vector<8x1xf32>
    %cst_23 = arith.constant 0.001953125 : f32
    %39 = vector.broadcast %cst_23 : f32 to vector<8x1xf32>
    %40 = arith.mulf %38, %39 : vector<8x1xf32>
    %41 = vector.broadcast %40 : vector<8x1xf32> to vector<8x512xf32>
    %42 = arith.subf %36, %41 : vector<8x512xf32>
    %43 = arith.mulf %42, %42 : vector<8x512xf32>
    %cst_24 = arith.constant dense<0.000000e+00> : vector<8xf32>
    %44 = vector.multi_reduction <add>, %43, %cst_24 [1] : vector<8x512xf32> to vector<8xf32>
    %45 = vector.shape_cast %44 : vector<8xf32> to vector<8x1xf32>
    %cst_25 = arith.constant 0.001953125 : f32
    %46 = vector.broadcast %cst_25 : f32 to vector<8x1xf32>
    %47 = arith.mulf %45, %46 : vector<8x1xf32>
    %cst_26 = arith.constant 9.99999974E-6 : f32
    %48 = vector.broadcast %cst_26 : f32 to vector<8x1xf32>
    %49 = arith.addf %47, %48 : vector<8x1xf32>
    %50 = math.rsqrt %49 : vector<8x1xf32>
    %51 = vector.broadcast %50 : vector<8x1xf32> to vector<8x512xf32>
    %52 = arith.mulf %42, %51 : vector<8x512xf32>
    %53 = vector.broadcast %4 : vector<1x512xf32> to vector<8x512xf32>
    %54 = arith.mulf %52, %53 : vector<8x512xf32>
    %55 = vector.broadcast %5 : vector<1x512xf32> to vector<8x512xf32>
    %56 = arith.addf %54, %55 : vector<8x512xf32>
    %c0_27 = arith.constant 0 : index
    %c0_28 = arith.constant 0 : index
    %57 = vector.load %arg6[%c0_27, %c0_28] : memref<8x512xf32, #tpu.memory_space<vmem>>, vector<8x512xf32>
    tpu.vector_store %arg6[%c0_27, %c0_28], %56 {strides = array<i32>} : memref<8x512xf32, #tpu.memory_space<vmem>>, vector<8x512xf32>,
    return
  }
  func.func @transform_0(%arg0: i32) -> (i32, i32) {
    %c0_i32 = arith.constant 0 : i32
    %c0_i32_0 = arith.constant 0 : i32
    return %arg0, %c0_i32 : i32, i32
  }
  func.func @transform_1(%arg0: i32) -> (i32, i32) {
    %c0_i32 = arith.constant 0 : i32
    %c0_i32_0 = arith.constant 0 : i32
    %c0_i32_1 = arith.constant 0 : i32
    return %c0_i32, %c0_i32_0 : i32, i32
  }
  func.func @transform_2(%arg0: i32) -> (i32, i32) {
    %c0_i32 = arith.constant 0 : i32
    %c0_i32_0 = arith.constant 0 : i32
    %c0_i32_1 = arith.constant 0 : i32
    return %c0_i32, %c0_i32_0 : i32, i32
  }
  func.func @transform_3(%arg0: i32) -> (i32, i32) {
    %c0_i32 = arith.constant 0 : i32
    %c0_i32_0 = arith.constant 0 : i32
    %c0_i32_1 = arith.constant 0 : i32
    return %c0_i32, %c0_i32_0 : i32, i32
  }
  func.func @transform_4(%arg0: i32) -> (i32, i32) {
    %c0_i32 = arith.constant 0 : i32
    %c0_i32_0 = arith.constant 0 : i32
    %c0_i32_1 = arith.constant 0 : i32
    return %c0_i32, %c0_i32_0 : i32, i32
  }
  func.func @transform_5(%arg0: i32) -> (i32, i32) {
    %c0_i32 = arith.constant 0 : i32
    %c0_i32_0 = arith.constant 0 : i32
    return %arg0, %c0_i32 : i32, i32
  }
}

</mosaic_0001>

<llo_original>
// kernel: tpu_custom_call.1
$region0: #{tpu_custom_call.1}
  #allocation0 [shape = 'u32[]', space=smem, size = 0x4, offset = 0x4, fixed_abs, tag = 'smem constant byte address 0x4 - core index']
  #allocation1 [shape = 'u32[72,128]{1,0:T(1,128)}', space=vmem, size = 0x9000, scoped, tag = 'internal scratch']
  %s0 = inlined_call_operand.hbm [shape: f32[8,32], index: 0, kind: input, shape index: {}]
  %s1 = inlined_call_operand.hbm [shape: f32[32,64], index: 1, kind: input, shape index: {}]
  %s2 = inlined_call_operand.hbm [shape: f32[3,64], index: 2, kind: input, shape index: {}]
  %s3 = inlined_call_operand.hbm [shape: f32[64,512], index: 3, kind: input, shape index: {}]
  %s4 = inlined_call_operand.hbm [shape: f32[3,512], index: 4, kind: input, shape index: {}]
  %s5 = inlined_call_operand.hbm [shape: f32[8,512], index: 5, kind: output, shape index: {}]
  %s6 = sld [smem:[#allocation0]]
  $region50: #{tpu_custom_call.1} parent=0
    _
  %s8 = ssub.s32 1, %s6
  %s9 = scalar_select 0, %s8, %s6
  $region1: #{tpu_custom_call.1} parent=0
    #allocation2 [shape = 'u8[4096]{0}', space=vmem, size = 0x1000, scoped, tag = 'input window, operand 0, single buffered']
    #allocation3 [shape = 's32[1]{0}', space=sflag, size = 0x4, scoped, tag = 'scoped memory for tpu_custom_call.1']
    #allocation4 [shape = 's32[1]{0}', space=sflag, size = 0x4, scoped, tag = 'scoped memory for tpu_custom_call.1']
    #allocation5 [shape = 'u8[16384]{0}', space=vmem, size = 0x4000, scoped, tag = 'input window, operand 1, single buffered']
    #allocation6 [shape = 's32[1]{0}', space=sflag, size = 0x4, scoped, tag = 'scoped memory for tpu_custom_call.1']
    #allocation7 [shape = 'u8[2048]{0}', space=vmem, size = 0x800, scoped, tag = 'input window, operand 2, single buffered']
    #allocation8 [shape = 'u8[131072]{0}', space=vmem, size = 0x20000, scoped, tag = 'input window, operand 3, single buffered']
    #allocation9 [shape = 's32[1]{0}', space=sflag, size = 0x4, scoped, tag = 'scoped memory for tpu_custom_call.1']
    #allocation10 [shape = 'u8[8192]{0}', space=vmem, size = 0x2000, scoped, tag = 'input window, operand 4, single buffered']
    #allocation11 [shape = 'u8[16384]{0}', space=vmem, size = 0x4000, scoped, tag = 'output window, operand 0, single buffered']
    %10 = vsyncpa [#allocation3], 0
    %11 = vsyncpa [#allocation6], 0
    %12 = vsyncpa [#allocation9], 0
    %13 = vsyncpa [#allocation4], 0
    // Predicated region
    $region2: #{tpu_custom_call.1} parent=1 // pred_check
      _
    $region3: #{tpu_custom_call.1} parent=1 // pred_check_branch
      %15 = sbr.rel (0) target = $region5
    $region4: #{tpu_custom_call.1} parent=1 // pred_region
      %17 = vsyncadd [#allocation3], 0
      %s19 = sshll.u32 %s0, 4
      %s20 = int_to_ptr.hbm [resolvable:$true] %s19
      %s21 = sshll.u32 [#allocation2], 4
      %s22 = int_to_ptr.vmem [resolvable:$true] %s21
      %24 = dma.hbm_to_vmem [thread:$0]  %s20, 128, %s22, [#allocation3]
    $region5: #{tpu_custom_call.1} parent=1 // pred_fallthru
      _
    // Predicated region
    $region6: #{tpu_custom_call.1} parent=1 // pred_check
      _
    $region7: #{tpu_custom_call.1} parent=1 // pred_check_branch
      %26 = sbr.rel (0) target = $region9
    $region8: #{tpu_custom_call.1} parent=1 // pred_region
      %28 = vsyncadd [#allocation6], 0
      %s29 = sshll.u32 %s1, 4
      %s30 = int_to_ptr.hbm [resolvable:$true] %s29
      %s31 = sshll.u32 [#allocation5], 4
      %s32 = int_to_ptr.vmem [resolvable:$true] %s31
      %37 = dma.hbm_to_vmem [thread:$0]  %s30, 512, %s32, [#allocation6], 128, 128, 8
    $region9: #{tpu_custom_call.1} parent=1 // pred_fallthru
      _
    // Predicated region
    $region10: #{tpu_custom_call.1} parent=1 // pred_check
      _
    $region11: #{tpu_custom_call.1} parent=1 // pred_check_branch
      %39 = sbr.rel (0) target = $region13
    $region12: #{tpu_custom_call.1} parent=1 // pred_region
      %41 = vsyncadd [#allocation6], 0
      %s43 = sshll.u32 %s2, 4
      %s44 = int_to_ptr.hbm [resolvable:$true] %s43
      %s45 = sshll.u32 [#allocation7], 4
      %s46 = int_to_ptr.vmem [resolvable:$true] %s45
      %48 = dma.hbm_to_vmem [thread:$0]  %s44, 64, %s46, [#allocation6]
    $region13: #{tpu_custom_call.1} parent=1 // pred_fallthru
      _
    // Predicated region
    $region14: #{tpu_custom_call.1} parent=1 // pred_check
      _
    $region15: #{tpu_custom_call.1} parent=1 // pred_check_branch
      %50 = sbr.rel (0) target = $region17
    $region16: #{tpu_custom_call.1} parent=1 // pred_region
      %52 = vsyncadd [#allocation9], 0
      %s53 = sshll.u32 %s3, 4
      %s54 = int_to_ptr.hbm [resolvable:$true] %s53
      %s55 = sshll.u32 [#allocation8], 4
      %s56 = int_to_ptr.vmem [resolvable:$true] %s55
      %61 = dma.hbm_to_vmem [thread:$0]  %s54, 4096, %s56, [#allocation9], 512, 512, 32
    $region17: #{tpu_custom_call.1} parent=1 // pred_fallthru
      _
    // Predicated region
    $region18: #{tpu_custom_call.1} parent=1 // pred_check
      _
    $region19: #{tpu_custom_call.1} parent=1 // pred_check_branch
      %63 = sbr.rel (0) target = $region21
    $region20: #{tpu_custom_call.1} parent=1 // pred_region
      %65 = vsyncadd [#allocation9], 0
      %s67 = sshll.u32 %s4, 4
      %s68 = int_to_ptr.hbm [resolvable:$true] %s67
      %s69 = sshll.u32 [#allocation10], 4
      %s70 = int_to_ptr.vmem [resolvable:$true] %s69
      %72 = dma.hbm_to_vmem [thread:$0]  %s68, 256, %s70, [#allocation9]
    $region21: #{tpu_custom_call.1} parent=1 // pred_fallthru
      _
    // Predicated region
    $region22: #{tpu_custom_call.1} parent=1 // pred_check
      _
    $region23: #{tpu_custom_call.1} parent=1 // pred_check_branch
      %74 = sbr.rel (0) target = $region25
    $region24: #{tpu_custom_call.1} parent=1 // pred_region
      %76 = dma.done [#allocation3], 128
    $region25: #{tpu_custom_call.1} parent=1 // pred_fallthru
      _
    // Predicated region
    $region26: #{tpu_custom_call.1} parent=1 // pred_check
      _
    $region27: #{tpu_custom_call.1} parent=1 // pred_check_branch
      %78 = sbr.rel (0) target = $region29
    $region28: #{tpu_custom_call.1} parent=1 // pred_region
      %80 = dma.done [#allocation6], 512
    $region29: #{tpu_custom_call.1} parent=1 // pred_fallthru
      _
    // Predicated region
    $region30: #{tpu_custom_call.1} parent=1 // pred_check
      _
    $region31: #{tpu_custom_call.1} parent=1 // pred_check_branch
      %82 = sbr.rel (0) target = $region33
    $region32: #{tpu_custom_call.1} parent=1 // pred_region
      %84 = dma.done [#allocation6], 64
    $region33: #{tpu_custom_call.1} parent=1 // pred_fallthru
      _
    // Predicated region
    $region34: #{tpu_custom_call.1} parent=1 // pred_check
      _
    $region35: #{tpu_custom_call.1} parent=1 // pred_check_branch
      %86 = sbr.rel (0) target = $region37
    $region36: #{tpu_custom_call.1} parent=1 // pred_region
      %88 = dma.done [#allocation9], 4096
    $region37: #{tpu_custom_call.1} parent=1 // pred_fallthru
      _
    // Predicated region
    $region38: #{tpu_custom_call.1} parent=1 // pred_check
      _
    $region39: #{tpu_custom_call.1} parent=1 // pred_check_branch
      %90 = sbr.rel (0) target = $region41
    $region40: #{tpu_custom_call.1} parent=1 // pred_region
      %92 = dma.done [#allocation9], 256
    $region41: #{tpu_custom_call.1} parent=1 // pred_fallthru
      _
    %v93 = vld [vmem:[#allocation7] sm:$0x1]
    %v94 = vld [vmem:[#allocation7 + $0x1] sm:$0x1]
    %v95 = vld [vmem:[#allocation7 + $0x2] sm:$0x1]
    %v96 = vld [vmem:[#allocation10] ss:$4 sm:$0xf]
    %s97 = scalar_lea.vmem [#allocation10], 1
    %v98 = vld [vmem:[%s97] ss:$4 sm:$0xf]
    %s99 = scalar_lea.vmem [#allocation10], 2
    %v100 = vld [vmem:[%s99] ss:$4 sm:$0xf]
    %v101 = vld [vmem:[#allocation2] sm:$0xff]
    %v102 = vld [vmem:[#allocation5] sm:$0xff]
    %v103 = vld [vmem:[#allocation5 + $0x8] sm:$0xff]
    %v104 = vld [vmem:[#allocation5 + $0x10] sm:$0xff]
    %v105 = vld [vmem:[#allocation5 + $0x18] sm:$0xff]
    %v106 = vperm.slane %v93, 0
    %vm107 = vcmask 261120
    %v109 = vsel %vm107, %v101, 0
    %111 = vmatpush.msra.mxu0 0.0
    %112 = vmatpush.msra.mxu0 0.0
    %113 = vmatpush.msra.mxu0 0.0
    %114 = vmatpush.msra.mxu0 0.0
    %115 = vmatpush.msra.mxu0 0.0
    %116 = vmatpush.msra.mxu0 0.0
    %117 = vmatpush.msra.mxu0 0.0
    %118 = vmatpush.msra.mxu0 0.0
    %119 = vmatpush.msra.mxu0 0.0
    %120 = vmatpush.msra.mxu0 0.0
    %121 = vmatpush.msra.mxu0 0.0
    %122 = vmatpush.msra.mxu0 0.0
    %123 = vmatpush.msra.mxu0 %v105
    %124 = vmatpush.msra.mxu0 %v104
    %125 = vmatpush.msra.mxu0 %v103
    %126 = vmatpush.msra.mxu0 %v102
    %127 = vmatmul.f32.gmra.mxu0 %v109
    %v128 = vpop.f32.mrf.mxu0
    %v129 = vadd.f32 %v106, %v128
    %130 = vdwg.mxu0
    %v131 = vmax.f32 %v129, 0.0
    %vm132 = vcmask 523264
    %v133 = vsel %vm132, %v131, 0.0
    %134 = vadd.xlane.f32.xlu0 %v133
    %v135 = vpop.xlane.xlu0 %134
    %v136 = vmul.f32 %v135, 0.015625
    %v137 = vsub.f32 %v131, %v136
    %v138 = vmul.f32 %v137, %v137
    %v139 = vsel %vm132, %v138, 0.0
    %140 = vadd.xlane.f32.xlu0 %v139
    %v141 = vpop.xlane.xlu0 %140
    %v142 = vmul.f32 %v141, 0.015625
    %v143 = vadd.f32 %v142, 1e-05
    %v144 = vrsqrt.pop %v143
    %v145 = vmul.f32 %v144, %v143
    %v146 = vmul.f32 %v145, %v144
    %v147 = vmul.f32 0.5, %v146
    %v148 = vsub.f32 1.5, %v147
    %v149 = vmul.f32 %v144, %v148
    %vm150 = vweird.f32 %v143
    %vm151 = vweird.f32 %v144
    %vm152 = vmor %vm150, %vm151
    %v153 = vsel %vm152, %v144, %v149
    %v154 = vmul.f32 %v137, %v153
    %v155 = vperm.slane %v94, 0
    %v156 = vmul.f32 %v154, %v155
    %v157 = vperm.slane %v95, 0
    %v158 = vadd.f32 %v156, %v157
    %v159 = vld [vmem:[#allocation8] sm:$0xff]
    %v160 = vld [vmem:[#allocation8 + $0x8] sm:$0xff]
    %v161 = vld [vmem:[#allocation8 + $0x10] sm:$0xff]
    %v162 = vld [vmem:[#allocation8 + $0x18] sm:$0xff]
    %v163 = vld [vmem:[#allocation8 + $0x20] sm:$0xff]
    %v164 = vld [vmem:[#allocation8 + $0x28] sm:$0xff]
    %v165 = vld [vmem:[#allocation8 + $0x30] sm:$0xff]
    %v166 = vld [vmem:[#allocation8 + $0x38] sm:$0xff]
    %v167 = vld [vmem:[#allocation8 + $0x40] sm:$0xff]
    %v168 = vld [vmem:[#allocation8 + $0x48] sm:$0xff]
    %v169 = vld [vmem:[#allocation8 + $0x50] sm:$0xff]
    %v170 = vld [vmem:[#allocation8 + $0x58] sm:$0xff]
    %v171 = vld [vmem:[#allocation8 + $0x60] sm:$0xff]
    %v172 = vld [vmem:[#allocation8 + $0x68] sm:$0xff]
    %v173 = vld [vmem:[#allocation8 + $0x70] sm:$0xff]
    %v174 = vld [vmem:[#allocation8 + $0x78] sm:$0xff]
    %v175 = vld [vmem:[#allocation8 + $0x80] sm:$0xff]
    %v176 = vld [vmem:[#allocation8 + $0x88] sm:$0xff]
    %v177 = vld [vmem:[#allocation8 + $0x90] sm:$0xff]
    %v178 = vld [vmem:[#allocation8 + $0x98] sm:$0xff]
    %v179 = vld [vmem:[#allocation8 + $0xa0] sm:$0xff]
    %v180 = vld [vmem:[#allocation8 + $0xa8] sm:$0xff]
    %v181 = vld [vmem:[#allocation8 + $0xb0] sm:$0xff]
    %v182 = vld [vmem:[#allocation8 + $0xb8] sm:$0xff]
    %v183 = vld [vmem:[#allocation8 + $0xc0] sm:$0xff]
    %v184 = vld [vmem:[#allocation8 + $0xc8] sm:$0xff]
    %v185 = vld [vmem:[#allocation8 + $0xd0] sm:$0xff]
    %v186 = vld [vmem:[#allocation8 + $0xd8] sm:$0xff]
    %v187 = vld [vmem:[#allocation8 + $0xe0] sm:$0xff]
    %v188 = vld [vmem:[#allocation8 + $0xe8] sm:$0xff]
    %v189 = vld [vmem:[#allocation8 + $0xf0] sm:$0xff]
    %v190 = vld [vmem:[#allocation8 + $0xf8] sm:$0xff]
    %v192 = vperm.slane %v96, 0
    %v193 = vperm.slane %v96, 1
    %v194 = vperm.slane %v96, 2
    %v195 = vperm.slane %v96, 3
    %v201 = vsel %vm132, %v158, 0
    %203 = vmatpush.msra.mxu0 0.0
    %204 = vmatpush.msra.mxu0 0.0
    %205 = vmatpush.msra.mxu0 0.0
    %206 = vmatpush.msra.mxu0 0.0
    %207 = vmatpush.msra.mxu0 0.0
    %208 = vmatpush.msra.mxu0 0.0
    %209 = vmatpush.msra.mxu0 0.0
    %210 = vmatpush.msra.mxu0 0.0
    %211 = vmatpush.msra.mxu0 %v187
    %212 = vmatpush.msra.mxu0 %v183
    %213 = vmatpush.msra.mxu0 %v179
    %214 = vmatpush.msra.mxu0 %v175
    %215 = vmatpush.msra.mxu0 %v171
    %216 = vmatpush.msra.mxu0 %v167
    %217 = vmatpush.msra.mxu0 %v163
    %218 = vmatpush.msra.mxu0 %v159
    %219 = vmatmul.f32.gmra.mxu0 %v201
    %v220 = vpop.f32.mrf.mxu0
    %v221 = vadd.f32 %v192, %v220
    %222 = vdwg.mxu0
    %223 = vmatpush.msra.mxu0 0.0
    %224 = vmatpush.msra.mxu0 0.0
    %225 = vmatpush.msra.mxu0 0.0
    %226 = vmatpush.msra.mxu0 0.0
    %227 = vmatpush.msra.mxu0 0.0
    %228 = vmatpush.msra.mxu0 0.0
    %229 = vmatpush.msra.mxu0 0.0
    %230 = vmatpush.msra.mxu0 0.0
    %231 = vmatpush.msra.mxu0 %v188
    %232 = vmatpush.msra.mxu0 %v184
    %233 = vmatpush.msra.mxu0 %v180
    %234 = vmatpush.msra.mxu0 %v176
    %235 = vmatpush.msra.mxu0 %v172
    %236 = vmatpush.msra.mxu0 %v168
    %237 = vmatpush.msra.mxu0 %v164
    %238 = vmatpush.msra.mxu0 %v160
    %239 = vmatmul.f32.gmra.mxu0 %v201
    %v240 = vpop.f32.mrf.mxu0
    %v241 = vadd.f32 %v193, %v240
    %242 = vdwg.mxu0
    %243 = vmatpush.msra.mxu0 0.0
    %244 = vmatpush.msra.mxu0 0.0
    %245 = vmatpush.msra.mxu0 0.0
    %246 = vmatpush.msra.mxu0 0.0
    %247 = vmatpush.msra.mxu0 0.0
    %248 = vmatpush.msra.mxu0 0.0
    %249 = vmatpush.msra.mxu0 0.0
    %250 = vmatpush.msra.mxu0 0.0
    %251 = vmatpush.msra.mxu0 %v189
    %252 = vmatpush.msra.mxu0 %v185
    %253 = vmatpush.msra.mxu0 %v181
    %254 = vmatpush.msra.mxu0 %v177
    %255 = vmatpush.msra.mxu0 %v173
    %256 = vmatpush.msra.mxu0 %v169
    %257 = vmatpush.msra.mxu0 %v165
    %258 = vmatpush.msra.mxu0 %v161
    %259 = vmatmul.f32.gmra.mxu0 %v201
    %v260 = vpop.f32.mrf.mxu0
    %v261 = vadd.f32 %v194, %v260
    %262 = vdwg.mxu0
    %263 = vmatpush.msra.mxu0 0.0
    %264 = vmatpush.msra.mxu0 0.0
    %265 = vmatpush.msra.mxu0 0.0
    %266 = vmatpush.msra.mxu0 0.0
    %267 = vmatpush.msra.mxu0 0.0
    %268 = vmatpush.msra.mxu0 0.0
    %269 = vmatpush.msra.mxu0 0.0
    %270 = vmatpush.msra.mxu0 0.0
    %271 = vmatpush.msra.mxu0 %v190
    %272 = vmatpush.msra.mxu0 %v186
    %273 = vmatpush.msra.mxu0 %v182
    %274 = vmatpush.msra.mxu0 %v178
    %275 = vmatpush.msra.mxu0 %v174
    %276 = vmatpush.msra.mxu0 %v170
    %277 = vmatpush.msra.mxu0 %v166
    %278 = vmatpush.msra.mxu0 %v162
    %279 = vmatmul.f32.gmra.mxu0 %v201
    %v280 = vpop.f32.mrf.mxu0
    %v281 = vadd.f32 %v195, %v280
    %282 = vdwg.mxu0
    %v283 = vadd.f32 %v221, %v241
    %v284 = vadd.f32 %v283, %v261
    %v285 = vadd.f32 %v284, %v281
    %286 = vadd.xlane.f32.xlu0 %v285
    %v287 = vpop.xlane.xlu0 %286
    %v288 = vmul.f32 %v287, 0.001953125
    %v289 = vsub.f32 %v221, %v288
    %v290 = vsub.f32 %v241, %v288
    %v291 = vsub.f32 %v261, %v288
    %v292 = vsub.f32 %v281, %v288
    %v293 = vmul.f32 %v289, %v289
    %v294 = vmul.f32 %v290, %v290
    %v295 = vmul.f32 %v291, %v291
    %v296 = vmul.f32 %v292, %v292
    %v297 = vadd.f32 %v293, %v294
    %v298 = vadd.f32 %v297, %v295
    %v299 = vadd.f32 %v298, %v296
    %300 = vadd.xlane.f32.xlu0 %v299
    %v301 = vpop.xlane.xlu0 %300
    %v302 = vmul.f32 %v301, 0.001953125
    %v303 = vadd.f32 %v302, 1e-05
    %v304 = vrsqrt.pop %v303
    %v305 = vmul.f32 %v304, %v303
    %v306 = vmul.f32 %v305, %v304
    %v307 = vmul.f32 0.5, %v306
    %v308 = vsub.f32 1.5, %v307
    %v309 = vmul.f32 %v304, %v308
    %vm310 = vweird.f32 %v303
    %vm311 = vweird.f32 %v304
    %vm312 = vmor %vm310, %vm311
    %v313 = vsel %vm312, %v304, %v309
    %v314 = vmul.f32 %v289, %v313
    %v315 = vmul.f32 %v290, %v313
    %v316 = vmul.f32 %v291, %v313
    %v317 = vmul.f32 %v292, %v313
    %v319 = vperm.slane %v98, 0
    %v320 = vperm.slane %v98, 1
    %v321 = vperm.slane %v98, 2
    %v322 = vperm.slane %v98, 3
    %v327 = vmul.f32 %v314, %v319
    %v328 = vmul.f32 %v315, %v320
    %v329 = vmul.f32 %v316, %v321
    %v330 = vmul.f32 %v317, %v322
    %v332 = vperm.slane %v100, 0
    %v333 = vperm.slane %v100, 1
    %v334 = vperm.slane %v100, 2
    %v335 = vperm.slane %v100, 3
    %v340 = vadd.f32 %v327, %v332
    %v341 = vadd.f32 %v328, %v333
    %v342 = vadd.f32 %v329, %v334
    %v343 = vadd.f32 %v330, %v335
    %344 = vst [vmem:[#allocation11] sm:$0xff] %v340
    %345 = vst [vmem:[#allocation11 + $0x8] sm:$0xff] %v341
    %346 = vst [vmem:[#allocation11 + $0x10] sm:$0xff] %v342
    %347 = vst [vmem:[#allocation11 + $0x18] sm:$0xff] %v343
    // Predicated region
    $region42: #{tpu_custom_call.1} parent=1 // pred_check
      _
    $region43: #{tpu_custom_call.1} parent=1 // pred_check_branch
      %349 = sbr.rel (0) target = $region45
    $region44: #{tpu_custom_call.1} parent=1 // pred_region
      %351 = vsyncadd [#allocation4], 0
      %s353 = sshll.u32 [#allocation11], 4
      %s354 = int_to_ptr.vmem [resolvable:$true] %s353
      %s355 = sshll.u32 %s5, 4
      %s356 = int_to_ptr.hbm [resolvable:$true] %s355
      %358 = dma.vmem_to_hbm [thread:$0]  %s354, 512, %s356, [#allocation4]
    $region45: #{tpu_custom_call.1} parent=1 // pred_fallthru
      _
    // Predicated region
    $region46: #{tpu_custom_call.1} parent=1 // pred_check
      _
    $region47: #{tpu_custom_call.1} parent=1 // pred_check_branch
      %360 = sbr.rel (0) target = $region49
    $region48: #{tpu_custom_call.1} parent=1 // pred_region
      %362 = dma.done [#allocation4], 512
    $region49: #{tpu_custom_call.1} parent=1 // pred_fallthru
      _
    %363 = vsyncpa [#allocation3], 1
    %364 = vsyncpa [#allocation6], 1
    %365 = vsyncpa [#allocation9], 1
    %366 = vsyncpa [#allocation4], 1

</llo_original>
